<compile_context>
chip_gen: v7x
topology: tpu7x:2x2x1
jax: 0.10.0
libtpu: 0.0.40
codegen_flags: <defaults>
</compile_context>

<pallas_src>
import math
import functools

import jax
import jax.numpy as jnp
import numpy as np
from jax.experimental import pallas as pl
from jax.experimental.pallas import tpu as pltpu


def _gaussian_taps_1d(size, sigma):
    """Unnormalized 1D taps, mirroring the torch module's construction
    (including the quirky (x - mean) / (2*std) exponent)."""
    x = np.arange(size, dtype=np.float64)
    mean = (size - 1) / 2.0
    return (1.0 / (sigma * math.sqrt(2.0 * math.pi))) * np.exp(
        -(((x - mean) / (2.0 * sigma)) ** 2)
    )


def _choose_plane_block(P, HW):
    """Pick (planes-per-step B, vmem_limit_bytes).

    B is always either == P or a multiple of 8 (BlockSpec second-to-last-dim
    rule), and we prefer >= ~8 grid steps when P is large so the software
    pipeline actually overlaps DMA with compute (>= 4 steps per TC on v7x).
    """
    # Generation-aware VMEM budget: ~1/3 of physical VMEM, clamped to
    # [8, 48] MiB  (v5e/v6e: 128 MiB -> ~42 MiB, v7x: 64 MiB -> ~21 MiB).
    try:
        vmem_bytes = int(pltpu.get_tpu_info().vmem_capacity_bytes)
    except Exception:  # not on a TPU device / API unavailable
        vmem_bytes = 64 << 20
    budget = max(8 << 20, min(48 << 20, vmem_bytes // 3))

    # Per-plane VMEM: double-buffered input + output (2x2) plus ~2 temporaries
    # (roll-based shifts no longer materialize per-tap copies).
    per_plane = HW * 4 * 6
    cap = max(1, budget // per_plane)

    if P <= 64 and P <= cap:
        return P, budget                      # one full block (alignment-exempt)

    b = min(cap, pl.cdiv(P, 8))               # aim for >= 8 grid steps
    if b >= 8:
        b = (b // 8) * 8                      # sublane-aligned leading dim
    else:
        # TODO(synk): planes too large for an 8-row block would need lane
        # tiling; accept a slight budget overshoot instead (rare case).
        b = min(8, P)
    return max(1, min(b, P)), budget


def _gauss_separable_kernel(x_ref, o_ref, *, W, kx, ky):
    """One grid step = B planes with a fused spatial axis.

    x_ref: (B, H*W) f32 in VMEM   (unpadded planes)
    o_ref: (B, H*W) f32 in VMEM
    kx/ky: Python float taps (W / H axis), baked as immediates.

    pltpu.roll wraps, so every tap's edge *and* wrap handling lives in a
    (1, H*W) coefficient row: tap value where the neighbour is in-bounds,
    0.0 where 'same' zero padding (or the wrapped lanes) applies.
    """
    Bb, HW = x_ref.shape
    t = x_ref[...]
    pw = len(kx) // 2
    ph = len(ky) // 2

    # (1, HW) index rows; broadcast over the B sublanes inside the FMAs.
    fused = jax.lax.broadcasted_iota(jnp.int32, (1, HW), 1)
    col = fused % W

    # roll(v, s)[:, f] == v[:, (f - s) % HW]; shifts kept non-negative.

    # Horizontal (W) pass.
    acc = kx[pw] * t
    for o in range(1, pw + 1):
        # right neighbour in[r, c+o]: valid only where c < W - o (this mask
        # also kills the fused-axis wrap, whose lanes have c >= W - o).
        cpos = jnp.where(col < W - o, jnp.float32(kx[pw + o]), 0.0)
        acc = acc + cpos * pltpu.roll(t, HW - o, axis=1)
        # left neighbour in[r, c-o]: valid only where c >= o.
        cneg = jnp.where(col >= o, jnp.float32(kx[pw - o]), 0.0)
        acc = acc + cneg * pltpu.roll(t, o, axis=1)

    # Vertical (H) pass: a fused-axis shift by o*W is a shift by o rows.
    out = ky[ph] * acc
    for o in range(1, ph + 1):
        # row below acc[r+o, c]: valid where r + o < H  <=>  fused < HW - o*W
        # (also masks the wrapped first-o-rows that roll brings in).
        vpos = jnp.where(fused < HW - o * W, jnp.float32(ky[ph + o]), 0.0)
        out = out + vpos * pltpu.roll(acc, HW - o * W, axis=1)
        # row above acc[r-o, c]: valid where r >= o  <=>  fused >= o*W.
        vneg = jnp.where(fused >= o * W, jnp.float32(ky[ph - o]), 0.0)
        out = out + vneg * pltpu.roll(acc, o * W, axis=1)

    o_ref[...] = out


def gaussian_smoothing(x, kernel_size=3, sigma=1.0):
    """Depthwise gaussian smoothing of an NCHW tensor, 'same' zero padding."""
    N, C, H, W = x.shape
    if isinstance(kernel_size, int):
        kh, kw = kernel_size, kernel_size
    else:
        kh, kw = kernel_size
    if isinstance(sigma, (int, float)):
        sh, sw = float(sigma), float(sigma)
    else:
        sh, sw = float(sigma[0]), float(sigma[1])
    assert kh % 2 == 1 and kw % 2 == 1, "'same' zero padding requires odd kernel sizes"

    # The torch 2D kernel is outer(g_h, g_w) normalized, which separates exactly
    # into individually-normalized 1D taps.
    gy = _gaussian_taps_1d(kh, sh)
    gx = _gaussian_taps_1d(kw, sw)
    ky = tuple(float(v) for v in (gy / gy.sum()))
    kx = tuple(float(v) for v in (gx / gx.sum()))

    P = N * C
    HW = H * W
    x2 = x.astype(jnp.float32).reshape(P, HW)   # free contiguous reshape

    B, vmem_limit = _choose_plane_block(P, HW)
    grid = (pl.cdiv(P, B),)

    out = pl.pallas_call(
        functools.partial(_gauss_separable_kernel, W=W, kx=kx, ky=ky),
        out_shape=jax.ShapeDtypeStruct((P, HW), jnp.float32),
        grid=grid,
        in_specs=[pl.BlockSpec((B, HW), lambda i: (i, 0))],
        out_specs=pl.BlockSpec((B, HW), lambda i: (i, 0)),
        compiler_params=pltpu.CompilerParams(
            dimension_semantics=("parallel",),
            vmem_limit_bytes=int(vmem_limit),
        ),
    )(x2)
    return out.reshape(N, C, H, W)


def _reference(x, kernel_size=3, sigma=1.0):
    """Pure-JAX reference: depthwise conv with the (quirky) torch 2D kernel."""
    N, C, H, W = x.shape
    kh = kw = kernel_size
    gy = _gaussian_taps_1d(kh, float(sigma))
    gx = _gaussian_taps_1d(kw, float(sigma))
    k2 = np.outer(gy, gx)
    k2 = (k2 / k2.sum()).astype(np.float32)
    w = jnp.broadcast_to(jnp.asarray(k2)[None, None], (C, 1, kh, kw))
    return jax.lax.conv_general_dilated(
        x.astype(jnp.float32),
        w,
        window_strides=(1, 1),
        padding=((kh // 2, kh // 2), (kw // 2, kw // 2)),
        dimension_numbers=("NCHW", "OIHW", "NCHW"),
        feature_group_count=C,
    )


if __name__ == "__main__":
    key = jax.random.PRNGKey(0)
    N, C, H, W = 2, 4, 16, 16
    x = jax.random.normal(key, (N, C, H, W), dtype=jnp.float32)

    y = jax.block_until_ready(gaussian_smoothing(x, kernel_size=3, sigma=1.0))
    y_ref = jax.block_until_ready(_reference(x, kernel_size=3, sigma=1.0))

    assert y.shape == (N, C, H, W)
    assert np.allclose(np.asarray(y), np.asarray(y_ref), atol=1e-5, rtol=1e-5)

    print("KERNEL_OK")
</pallas_src>

<mosaic_0001>
module attributes {stable_mosaic.version = 11 : i64} {
  func.func @_gauss_separable_kernel(%arg0: i32, %arg1: memref<8x256xf32, #tpu.memory_space<vmem>>, %arg2: memref<8x256xf32, #tpu.memory_space<vmem>>) attributes {dimension_semantics = [#tpu.dimension_semantics<parallel>], iteration_bounds = array<i64: 1>, scalar_prefetch = 0 : i64, scratch_operands = 0 : i64, tpu.core_type = #tpu.core_type<tc>, window_params = [{transform_indices = @transform_0, window_bounds = array<i64: 8, 256>}, {transform_indices = @transform_1, window_bounds = array<i64: 8, 256>}]} {
    %c0 = arith.constant 0 : index
    %c0_0 = arith.constant 0 : index
    %0 = vector.load %arg1[%c0, %c0_0] : memref<8x256xf32, #tpu.memory_space<vmem>>, vector<8x256xf32>
    %1 = tpu.iota {dimensions = array<i32: 1>} : vector<1x256xi32>
    %c16_i32 = arith.constant 16 : i32
    %c0_i32 = arith.constant 0 : i32
    %2 = arith.cmpi eq, %c16_i32, %c0_i32 : i32
    %c1_i32 = arith.constant 1 : i32
    %3 = arith.select %2, %c1_i32, %c16_i32 : i32
    %4 = vector.broadcast %3 : i32 to vector<1x256xi32>
    %5 = arith.remsi %1, %4 : vector<1x256xi32>
    %c0_i32_1 = arith.constant 0 : i32
    %6 = vector.broadcast %c0_i32_1 : i32 to vector<1x256xi32>
    %7 = arith.cmpi ne, %5, %6 : vector<1x256xi32>
    %c0_i32_2 = arith.constant 0 : i32
    %8 = vector.broadcast %c0_i32_2 : i32 to vector<1x256xi32>
    %9 = arith.cmpi slt, %5, %8 : vector<1x256xi32>
    %c0_i32_3 = arith.constant 0 : i32
    %10 = arith.cmpi slt, %3, %c0_i32_3 : i32
    %11 = vector.broadcast %10 : i1 to vector<1x256xi1>
    %12 = vector.broadcast %11 : vector<1x256xi1> to vector<1x256xi1>
    %13 = arith.xori %9, %12 : vector<1x256xi1>
    %14 = arith.andi %13, %7 : vector<1x256xi1>
    %15 = vector.broadcast %3 : i32 to vector<1x256xi32>
    %16 = arith.addi %5, %15 : vector<1x256xi32>
    %17 = arith.select %14, %16, %5 : vector<1x256xi1>, vector<1x256xi32>
    %cst = arith.constant 0.3909913 : f32
    %18 = vector.broadcast %cst : f32 to vector<8x256xf32>
    %19 = arith.mulf %18, %0 : vector<8x256xf32>
    %c15_i32 = arith.constant 15 : i32
    %20 = vector.broadcast %c15_i32 : i32 to vector<1x256xi32>
    %21 = arith.cmpi slt, %17, %20 : vector<1x256xi32>
    %cst_4 = arith.constant 0.304504335 : f32
    %cst_5 = arith.constant 0.000000e+00 : f32
    %22 = vector.broadcast %cst_4 : f32 to vector<1x256xf32>
    %23 = vector.broadcast %cst_5 : f32 to vector<1x256xf32>
    %24 = arith.select %21, %22, %23 : vector<1x256xi1>, vector<1x256xf32>
    %c255_i32 = arith.constant 255 : i32
    %25 = tpu.dynamic_rotate %0 by %c255_i32 dim 1 : vector<8x256xf32>, i32 -> vector<8x256xf32>
    %26 = vector.broadcast %24 : vector<1x256xf32> to vector<8x256xf32>
    %27 = arith.mulf %26, %25 : vector<8x256xf32>
    %28 = arith.addf %19, %27 : vector<8x256xf32>
    %c1_i32_6 = arith.constant 1 : i32
    %29 = vector.broadcast %c1_i32_6 : i32 to vector<1x256xi32>
    %30 = arith.cmpi sge, %17, %29 : vector<1x256xi32>
    %cst_7 = arith.constant 0.304504335 : f32
    %cst_8 = arith.constant 0.000000e+00 : f32
    %31 = vector.broadcast %cst_7 : f32 to vector<1x256xf32>
    %32 = vector.broadcast %cst_8 : f32 to vector<1x256xf32>
    %33 = arith.select %30, %31, %32 : vector<1x256xi1>, vector<1x256xf32>
    %c1_i32_9 = arith.constant 1 : i32
    %34 = tpu.dynamic_rotate %0 by %c1_i32_9 dim 1 : vector<8x256xf32>, i32 -> vector<8x256xf32>
    %35 = vector.broadcast %33 : vector<1x256xf32> to vector<8x256xf32>
    %36 = arith.mulf %35, %34 : vector<8x256xf32>
    %37 = arith.addf %28, %36 : vector<8x256xf32>
    %cst_10 = arith.constant 0.3909913 : f32
    %38 = vector.broadcast %cst_10 : f32 to vector<8x256xf32>
    %39 = arith.mulf %38, %37 : vector<8x256xf32>
    %c240_i32 = arith.constant 240 : i32
    %40 = vector.broadcast %c240_i32 : i32 to vector<1x256xi32>
    %41 = arith.cmpi slt, %1, %40 : vector<1x256xi32>
    %cst_11 = arith.constant 0.304504335 : f32
    %cst_12 = arith.constant 0.000000e+00 : f32
    %42 = vector.broadcast %cst_11 : f32 to vector<1x256xf32>
    %43 = vector.broadcast %cst_12 : f32 to vector<1x256xf32>
    %44 = arith.select %41, %42, %43 : vector<1x256xi1>, vector<1x256xf32>
    %c240_i32_13 = arith.constant 240 : i32
    %45 = tpu.dynamic_rotate %37 by %c240_i32_13 dim 1 : vector<8x256xf32>, i32 -> vector<8x256xf32>
    %46 = vector.broadcast %44 : vector<1x256xf32> to vector<8x256xf32>
    %47 = arith.mulf %46, %45 : vector<8x256xf32>
    %48 = arith.addf %39, %47 : vector<8x256xf32>
    %c16_i32_14 = arith.constant 16 : i32
    %49 = vector.broadcast %c16_i32_14 : i32 to vector<1x256xi32>
    %50 = arith.cmpi sge, %1, %49 : vector<1x256xi32>
    %cst_15 = arith.constant 0.304504335 : f32
    %cst_16 = arith.constant 0.000000e+00 : f32
    %51 = vector.broadcast %cst_15 : f32 to vector<1x256xf32>
    %52 = vector.broadcast %cst_16 : f32 to vector<1x256xf32>
    %53 = arith.select %50, %51, %52 : vector<1x256xi1>, vector<1x256xf32>
    %c16_i32_17 = arith.constant 16 : i32
    %54 = tpu.dynamic_rotate %37 by %c16_i32_17 dim 1 : vector<8x256xf32>, i32 -> vector<8x256xf32>
    %55 = vector.broadcast %53 : vector<1x256xf32> to vector<8x256xf32>
    %56 = arith.mulf %55, %54 : vector<8x256xf32>
    %57 = arith.addf %48, %56 : vector<8x256xf32>
    %c0_18 = arith.constant 0 : index
    %c0_19 = arith.constant 0 : index
    %58 = vector.load %arg2[%c0_18, %c0_19] : memref<8x256xf32, #tpu.memory_space<vmem>>, vector<8x256xf32>
    tpu.vector_store %arg2[%c0_18, %c0_19], %57 {strides = array<i32>} : memref<8x256xf32, #tpu.memory_space<vmem>>, vector<8x256xf32>,
    return
  }
  func.func @transform_0(%arg0: i32) -> (i32, i32) {
    %c0_i32 = arith.constant 0 : i32
    %c0_i32_0 = arith.constant 0 : i32
    return %arg0, %c0_i32 : i32, i32
  }
  func.func @transform_1(%arg0: i32) -> (i32, i32) {
    %c0_i32 = arith.constant 0 : i32
    %c0_i32_0 = arith.constant 0 : i32
    return %arg0, %c0_i32 : i32, i32
  }
}

</mosaic_0001>

<llo_original>
// kernel: tpu_custom_call.1
$region0: #{tpu_custom_call.1}
  #allocation0 [shape = 'u32[]', space=smem, size = 0x4, offset = 0x4, fixed_abs, tag = 'smem constant byte address 0x4 - core index']
  #allocation1 [shape = 'u32[144,128]{1,0:T(1,128)}', space=vmem, size = 0x12000, scoped, tag = 'internal scratch']
  %s0 = inlined_call_operand.hbm [shape: f32[8,256], index: 0, kind: input, shape index: {}]
  %s1 = inlined_call_operand.hbm [shape: f32[8,256], index: 1, kind: output, shape index: {}]
  %s2 = sld [smem:[#allocation0]]
  $region18: #{tpu_custom_call.1} parent=0
    _
  %s4 = ssub.s32 1, %s2
  %s5 = scalar_select 0, %s4, %s2
  $region1: #{tpu_custom_call.1} parent=0
    #allocation2 [shape = 'u8[8192]{0}', space=vmem, size = 0x2000, scoped, tag = 'input window, operand 0, single buffered']
    #allocation3 [shape = 's32[1]{0}', space=sflag, size = 0x4, scoped, tag = 'scoped memory for tpu_custom_call.1']
    #allocation4 [shape = 's32[1]{0}', space=sflag, size = 0x4, scoped, tag = 'scoped memory for tpu_custom_call.1']
    #allocation5 [shape = 'u8[8192]{0}', space=vmem, size = 0x2000, scoped, tag = 'output window, operand 0, single buffered']
    %6 = vsyncpa [#allocation3], 0
    %7 = vsyncpa [#allocation4], 0
    // Predicated region
    $region2: #{tpu_custom_call.1} parent=1 // pred_check
      _
    $region3: #{tpu_custom_call.1} parent=1 // pred_check_branch
      %9 = sbr.rel (0) target = $region5
    $region4: #{tpu_custom_call.1} parent=1 // pred_region
      %s11 = ssub.s32 256, 256
      %12 = vsyncadd [#allocation3], %s11
      %s14 = sshll.u32 [#allocation2], 4
      %s15 = int_to_ptr.vmem [resolvable:$true] %s14
      %17 = dma.hbm_to_vmem [thread:$0]  %s0, 256, %s15, [#allocation3]
    $region5: #{tpu_custom_call.1} parent=1 // pred_fallthru
      _
    // Predicated region
    $region6: #{tpu_custom_call.1} parent=1 // pred_check
      _
    $region7: #{tpu_custom_call.1} parent=1 // pred_check_branch
      %19 = sbr.rel (0) target = $region9
    $region8: #{tpu_custom_call.1} parent=1 // pred_region
      %20 = dma.done [#allocation3], 256
    $region9: #{tpu_custom_call.1} parent=1 // pred_fallthru
      _
    %v21 = vld [vmem:[#allocation2] sm:$0xff]
    %v22 = vld [vmem:[#allocation2 + $0x8] sm:$0xff]
    %v23 = vlaneseq
    %v24 = vand.u32 %v23, 127
    %v25 = vadd.s32 %v24, 128
    %vm26 = vcmp.lt.s32.totalorder %v24, 0
    %v27 = vsub.s32 0, %v24
    %v28 = vsel %vm26, %v27, %v24
    %v29 = vshrl.u32 %v28, 4
    %v30 = vand.u32 %v28, 15
    %v31 = vsub.s32 0, %v30
    %v32 = vsel %vm26, %v31, %v30
    %vm33 = vcmp.lt.s32.totalorder %v25, 0
    %v34 = vsub.s32 0, %v25
    %v35 = vsel %vm33, %v34, %v25
    %v36 = vshrl.u32 %v35, 4
    %v37 = vand.u32 %v35, 15
    %v38 = vsub.s32 0, %v37
    %v39 = vsel %vm33, %v38, %v37
    %vm40 = vcmp.ne.s32.totalorder %v32, 0
    %vm41 = vcmp.ne.s32.totalorder %v39, 0
    %vm42 = vcmp.lt.s32.totalorder %v32, 0
    %vm43 = vcmp.lt.s32.totalorder %v39, 0
    %vm44 = vmand %vm42, %vm40
    %vm45 = vmand %vm43, %vm41
    %v46 = vadd.s32 %v32, 16
    %v47 = vadd.s32 %v39, 16
    %v48 = vsel %vm44, %v46, %v32
    %v49 = vsel %vm45, %v47, %v39
    %v50 = vmul.f32 %v21, 0.3909913
    %v51 = vmul.f32 %v22, 0.3909913
    %vm52 = vcmp.lt.s32.totalorder %v48, 15
    %vm53 = vcmp.lt.s32.totalorder %v49, 15
    %v54 = vsel %vm52, 0.30450433, 0.0
    %v55 = vsel %vm53, 0.30450433, 0.0
    %56 = vrot.lane.b32.xlu0 %v21, 127
    %v57 = vpop.permute.xlu0 %56
    %58 = vrot.lane.b32.xlu0 %v22, 127
    %v59 = vpop.permute.xlu0 %58
    %vm60 = vcmp.lt.s32.totalorder %v24, 127
    %v61 = vsel %vm60, %v57, %v59
    %v62 = vsel %vm60, %v59, %v57
    %v63 = vmul.f32 %v54, %v61
    %v64 = vmul.f32 %v55, %v62
    %v65 = vadd.f32 %v50, %v63
    %v66 = vadd.f32 %v51, %v64
    %vm67 = vcmp.ge.s32.totalorder %v48, 1
    %vm68 = vcmp.ge.s32.totalorder %v49, 1
    %v69 = vsel %vm67, 0.30450433, 0.0
    %v70 = vsel %vm68, 0.30450433, 0.0
    %71 = vrot.lane.b32.xlu0 %v21, 1
    %v72 = vpop.permute.xlu0 %71
    %73 = vrot.lane.b32.xlu0 %v22, 1
    %v74 = vpop.permute.xlu0 %73
    %vm75 = vcmp.lt.s32.totalorder %v24, 1
    %v76 = vsel %vm75, %v72, %v74
    %v77 = vsel %vm75, %v74, %v72
    %v78 = vmul.f32 %v69, %v77
    %v79 = vmul.f32 %v70, %v76
    %v80 = vadd.f32 %v65, %v78
    %v81 = vadd.f32 %v66, %v79
    %v82 = vmul.f32 %v80, 0.3909913
    %v83 = vmul.f32 %v81, 0.3909913
    %vm84 = vcmp.lt.s32.totalorder %v24, 240
    %vm85 = vcmp.lt.s32.totalorder %v25, 240
    %v86 = vsel %vm84, 0.30450433, 0.0
    %v87 = vsel %vm85, 0.30450433, 0.0
    %88 = vrot.lane.b32.xlu0 %v80, 112
    %v89 = vpop.permute.xlu0 %88
    %90 = vrot.lane.b32.xlu0 %v81, 112
    %v91 = vpop.permute.xlu0 %90
    %vm92 = vcmp.lt.s32.totalorder %v24, 112
    %v93 = vsel %vm92, %v89, %v91
    %v94 = vsel %vm92, %v91, %v89
    %v95 = vmul.f32 %v86, %v93
    %v96 = vmul.f32 %v87, %v94
    %v97 = vadd.f32 %v82, %v95
    %v98 = vadd.f32 %v83, %v96
    %vm99 = vcmp.ge.s32.totalorder %v24, 16
    %vm100 = vcmp.ge.s32.totalorder %v25, 16
    %v101 = vsel %vm99, 0.30450433, 0.0
    %v102 = vsel %vm100, 0.30450433, 0.0
    %103 = vrot.lane.b32.xlu0 %v80, 16
    %v104 = vpop.permute.xlu0 %103
    %105 = vrot.lane.b32.xlu0 %v81, 16
    %v106 = vpop.permute.xlu0 %105
    %vm107 = vcmp.lt.s32.totalorder %v24, 16
    %v108 = vsel %vm107, %v104, %v106
    %v109 = vsel %vm107, %v106, %v104
    %v110 = vmul.f32 %v101, %v109
    %v111 = vmul.f32 %v102, %v108
    %v112 = vadd.f32 %v97, %v110
    %v113 = vadd.f32 %v98, %v111
    %114 = vst [vmem:[#allocation5] sm:$0xff] %v112
    %115 = vst [vmem:[#allocation5 + $0x8] sm:$0xff] %v113
    // Predicated region
    $region10: #{tpu_custom_call.1} parent=1 // pred_check
      _
    $region11: #{tpu_custom_call.1} parent=1 // pred_check_branch
      %117 = sbr.rel (0) target = $region13
    $region12: #{tpu_custom_call.1} parent=1 // pred_region
      %s119 = ssub.s32 256, 256
      %120 = vsyncadd [#allocation4], %s119
      %s122 = sshll.u32 [#allocation5], 4
      %s123 = int_to_ptr.vmem [resolvable:$true] %s122
      %125 = dma.vmem_to_hbm [thread:$0]  %s123, 256, %s1, [#allocation4]
    $region13: #{tpu_custom_call.1} parent=1 // pred_fallthru
      _
    // Predicated region
    $region14: #{tpu_custom_call.1} parent=1 // pred_check
      _
    $region15: #{tpu_custom_call.1} parent=1 // pred_check_branch
      %127 = sbr.rel (0) target = $region17
    $region16: #{tpu_custom_call.1} parent=1 // pred_region
      %128 = dma.done [#allocation4], 256
    $region17: #{tpu_custom_call.1} parent=1 // pred_fallthru
      _
    %129 = vsyncpa [#allocation3], 1
    %130 = vsyncpa [#allocation4], 1

</llo_original>
